<compile_context>
chip_gen: v7x
topology: tpu7x:2x2x1
jax: 0.10.0
libtpu: 0.0.40
codegen_flags: <defaults>
</compile_context>

<pallas_src>
import math

import jax
import jax.numpy as jnp
from jax.experimental import pallas as pl
from jax.experimental.pallas import tpu as pltpu


_MIN_PALLAS_BATCH = 64            # below this a plain XLA dot beats kernel launch cost
_VMEM_BUDGET = 16 * 1024 * 1024   # target working set for pipeline buffers
_VMEM_LIMIT = 40 * 1024 * 1024    # scoped VMEM limit (headroom on v5e/v6e/v7x)
_TB_MIN = 256                     # min rows per tile (amortize ~0.35us/step overhead)
_TB_MAX = 4096                    # max rows per tile (per-step DMA stays a few MiB)
_TN_MAX = 512                     # output-column tile when n_state is large
_TARGET_ROW_TILES = 4             # aim for >= 4 grid steps (v7x megacore + pipelining)
_SUBLANE = {4: 8, 2: 16, 1: 32}   # sublane packing by itemsize


def _round_up(a, m):
    return (a + m - 1) // m * m


def _affine_kernel(x_ref, u_ref, wa_ref, wb_ref, c_ref, z_ref):
    """z = x @ Wa + u @ Wb + c : two MXU pushes, f32 accumulate, f32 bias add."""
    acc = jnp.dot(x_ref[...], wa_ref[...], preferred_element_type=jnp.float32)
    acc = acc + jnp.dot(u_ref[...], wb_ref[...], preferred_element_type=jnp.float32)
    z_ref[...] = (acc + c_ref[...]).astype(z_ref.dtype)


def _pallas_affine(xk, uk, wa, wb, crow, out_dtype):
    """Tiled z = xk @ wa + uk @ wb + crow via pallas_call (rows x out-cols grid)."""
    m, ka = xk.shape
    kb = uk.shape[1]
    n = wa.shape[1]
    in_isz = jnp.dtype(xk.dtype).itemsize
    out_isz = jnp.dtype(out_dtype).itemsize
    sub = _SUBLANE.get(in_isz, 8)

    # ---- output-column tile (N tiling keeps huge weights streamable) ----
    tn = n if n <= _TN_MAX else _TN_MAX
    n_col_tiles = pl.cdiv(n, tn)

    # ---- adaptive row (batch) tile from the VMEM budget ----
    w_bytes = 2 * ((ka + kb) * tn * in_isz + tn * 4)        # weights + bias, x2 buffers
    row_bytes = 2 * ((ka + kb) * in_isz + tn * out_isz)     # x/u/z per row, x2 buffers
    tb_cap = max(sub, ((_VMEM_BUDGET - w_bytes) // row_bytes) // sub * sub)
    desired = max(_TB_MIN, _round_up(pl.cdiv(m, _TARGET_ROW_TILES), sub))
    tb = max(sub, min(tb_cap, desired, _TB_MAX, _round_up(m, sub)))
    n_row_tiles = pl.cdiv(m, tb)

    weight_fetches = 1 if n_col_tiles == 1 else n_row_tiles
    cost = pl.CostEstimate(
        flops=2 * m * (ka + kb) * n,
        transcendentals=0,
        bytes_accessed=(m * (ka + kb) * in_isz
                        + m * n * out_isz
                        + weight_fetches * ((ka + kb) * n * in_isz + n * 4)),
    )

    # TODO(synk): mark the weight/bias BlockSpecs pipeline_mode=pl.Buffered(1)
    # (constant-index blocks need no double buffer); the VMEM saved is
    # negligible for the small-state regime this module targets, so skipped.
    return pl.pallas_call(
        _affine_kernel,
        out_shape=jax.ShapeDtypeStruct((m, n), out_dtype),
        grid=(n_row_tiles, n_col_tiles),
        in_specs=[
            pl.BlockSpec((tb, ka), lambda i, j: (i, 0)),   # x tile (pipelined)
            pl.BlockSpec((tb, kb), lambda i, j: (i, 0)),   # u tile (pipelined)
            pl.BlockSpec((ka, tn), lambda i, j: (0, j)),   # Wa (VMEM-resident unless N-tiled)
            pl.BlockSpec((kb, tn), lambda i, j: (0, j)),   # Wb
            pl.BlockSpec((1, tn), lambda i, j: (0, j)),    # bias row (f32)
        ],
        out_specs=pl.BlockSpec((tb, tn), lambda i, j: (i, j)),
        compiler_params=pltpu.CompilerParams(
            dimension_semantics=("parallel", "parallel"),
            vmem_limit_bytes=_VMEM_LIMIT,
        ),
        cost_estimate=cost,
    )(xk, uk, wa, wb, crow)


@jax.jit
def affine_dynamics_forward(x, u, A, B, c=None):
    """z = x @ A.T + u @ B.T + c  (matches AffineDynamics.forward)."""
    x_was_1d = x.ndim == 1
    if x.ndim == 1:
        x = x[None, :]
    if u.ndim == 1:
        u = u[None, :]

    n_batch, n_state = x.shape
    n_ctrl = u.shape[1]
    in_dtype = x.dtype
    out_dtype = x.dtype

    # ---- tiny-problem fast path: kernel launch overhead dwarfs the work ----
    if n_batch < _MIN_PALLAS_BATCH:
        z = x @ A.T.astype(in_dtype) + u @ B.T.astype(in_dtype)
        if c is not None:
            z = (z.astype(jnp.float32) + c.astype(jnp.float32)).astype(out_dtype)
        return z[0] if x_was_1d else z

    sub = _SUBLANE.get(jnp.dtype(in_dtype).itemsize, 8)

    # ---- lane-dense fold: g batch rows per kernel row so g*n_state % 128 == 0 ----
    g = 128 // math.gcd(n_state, 128)
    use_fold = (
        g > 1
        and n_state < 128
        and g * (n_state + n_ctrl) <= 1024     # keep block-diag weights / MXU K small
        and n_batch % g == 0                   # fold reshape must be a free view
        and n_batch // g >= sub
    )

    if use_fold:
        # Block-diagonal weights: (folded row) @ kron(I_g, A.T) applies A.T to
        # each of the g packed batch rows independently.
        eye_g = jnp.eye(g, dtype=in_dtype)
        wa = jnp.kron(eye_g, A.T.astype(in_dtype))         # (g*ns, g*ns)
        wb = jnp.kron(eye_g, B.T.astype(in_dtype))         # (g*nc, g*ns)
        if c is None:
            crow = jnp.zeros((1, g * n_state), jnp.float32)
        else:
            crow = jnp.tile(c.astype(jnp.float32), g).reshape(1, g * n_state)
        xk = x.reshape(n_batch // g, g * n_state)          # row-major collapse: free view
        uk = u.reshape(n_batch // g, g * n_ctrl)
        zk = _pallas_affine(xk, uk, wa, wb, crow, out_dtype)
        z = zk.reshape(n_batch, n_state)
    else:
        # General path (ragged batch or n_state already wide). No pad, no
        # trailing slice: Pallas masks the ragged edge tiles in the DMA.
        wa = A.T.astype(in_dtype)
        wb = B.T.astype(in_dtype)
        if c is None:
            crow = jnp.zeros((1, n_state), jnp.float32)
        else:
            crow = c.reshape(1, n_state).astype(jnp.float32)
        z = _pallas_affine(x, u, wa, wb, crow, out_dtype)

    return z[0] if x_was_1d else z


if __name__ == "__main__":
    key = jax.random.PRNGKey(0)
    k1, k2, k3, k4, k5 = jax.random.split(key, 5)

    # Module-consistent small state/control dims; batch sized to exercise the
    # folded lane-dense Pallas path with a multi-step grid.
    n_state, n_ctrl = 16, 8
    A = jax.random.normal(k1, (n_state, n_state), dtype=jnp.float32)
    B = jax.random.normal(k2, (n_state, n_ctrl), dtype=jnp.float32)
    c = jax.random.normal(k3, (n_state,), dtype=jnp.float32)

    n_batch = 8192   # multiple of the fold (8) -> lane-dense folded path, 4 grid steps
    x = jax.random.normal(k4, (n_batch, n_state), dtype=jnp.float32)
    u = jax.random.normal(k5, (n_batch, n_ctrl), dtype=jnp.float32)

    z = affine_dynamics_forward(x, u, A, B, c)
    jax.block_until_ready(z)
    z_ref = x @ A.T + u @ B.T + c
    assert z.shape == (n_batch, n_state)
    assert jnp.allclose(z, z_ref, atol=1e-4, rtol=1e-4)

    # c=None through the kernel.
    z_nc = affine_dynamics_forward(x, u, A, B, None)
    jax.block_until_ready(z_nc)
    assert jnp.allclose(z_nc, x @ A.T + u @ B.T, atol=1e-4, rtol=1e-4)

    # Ragged batch (not a multiple of the fold) -> general path, no pad/slice,
    # masked edge tile handles the tail in-kernel.
    nb2 = 1003
    z2 = affine_dynamics_forward(x[:nb2], u[:nb2], A, B, c)
    jax.block_until_ready(z2)
    assert z2.shape == (nb2, n_state)
    assert jnp.allclose(z2, z_ref[:nb2], atol=1e-4, rtol=1e-4)

    # 1-D (unbatched) path -- tiny fast path, same semantics.
    z1 = affine_dynamics_forward(x[0], u[0], A, B, c)
    jax.block_until_ready(z1)
    assert z1.shape == (n_state,)
    assert jnp.allclose(z1, z_ref[0], atol=1e-4, rtol=1e-4)

    print("KERNEL_OK")
</pallas_src>

<mosaic_0001>
module attributes {stable_mosaic.version = 11 : i64} {
  func.func @_affine_kernel(%arg0: i32, %arg1: i32, %arg2: memref<256x128xf32, #tpu.memory_space<vmem>>, %arg3: memref<256x64xf32, #tpu.memory_space<vmem>>, %arg4: memref<128x128xf32, #tpu.memory_space<vmem>>, %arg5: memref<64x128xf32, #tpu.memory_space<vmem>>, %arg6: memref<1x128xf32, #tpu.memory_space<vmem>>, %arg7: memref<256x128xf32, #tpu.memory_space<vmem>>) attributes {dimension_semantics = [#tpu.dimension_semantics<parallel>, #tpu.dimension_semantics<parallel>], iteration_bounds = array<i64: 4, 1>, scalar_prefetch = 0 : i64, scratch_operands = 0 : i64, tpu.core_type = #tpu.core_type<tc>, window_params = [{transform_indices = @transform_0, window_bounds = array<i64: 256, 128>}, {transform_indices = @transform_1, window_bounds = array<i64: 256, 64>}, {transform_indices = @transform_2, window_bounds = array<i64: 128, 128>}, {transform_indices = @transform_3, window_bounds = array<i64: 64, 128>}, {transform_indices = @transform_4, window_bounds = array<i64: 1, 128>}, {transform_indices = @transform_5, window_bounds = array<i64: 256, 128>}]} {
    %c0 = arith.constant 0 : index
    %c0_0 = arith.constant 0 : index
    %0 = vector.load %arg2[%c0, %c0_0] : memref<256x128xf32, #tpu.memory_space<vmem>>, vector<256x128xf32>
    %c0_1 = arith.constant 0 : index
    %c0_2 = arith.constant 0 : index
    %1 = vector.load %arg4[%c0_1, %c0_2] : memref<128x128xf32, #tpu.memory_space<vmem>>, vector<128x128xf32>
    %cst = arith.constant dense<0.000000e+00> : vector<256x128xf32>
    %2 = tpu.matmul %0, %1, %cst {dimension_numbers = #tpu.dot_dimension_numbers<[1], [0], [0], [1], [0, 0, 1, 1], [], []>} : vector<256x128xf32>, vector<128x128xf32>, vector<256x128xf32> -> vector<256x128xf32>
    %c0_3 = arith.constant 0 : index
    %c0_4 = arith.constant 0 : index
    %3 = vector.load %arg3[%c0_3, %c0_4] : memref<256x64xf32, #tpu.memory_space<vmem>>, vector<256x64xf32>
    %c0_5 = arith.constant 0 : index
    %c0_6 = arith.constant 0 : index
    %4 = vector.load %arg5[%c0_5, %c0_6] : memref<64x128xf32, #tpu.memory_space<vmem>>, vector<64x128xf32>
    %cst_7 = arith.constant dense<0.000000e+00> : vector<256x128xf32>
    %5 = tpu.matmul %3, %4, %cst_7 {dimension_numbers = #tpu.dot_dimension_numbers<[1], [0], [0], [1], [0, 0, 1, 1], [], []>} : vector<256x64xf32>, vector<64x128xf32>, vector<256x128xf32> -> vector<256x128xf32>
    %6 = arith.addf %2, %5 : vector<256x128xf32>
    %c0_8 = arith.constant 0 : index
    %c0_9 = arith.constant 0 : index
    %7 = vector.load %arg6[%c0_8, %c0_9] : memref<1x128xf32, #tpu.memory_space<vmem>>, vector<1x128xf32>
    %8 = vector.broadcast %7 : vector<1x128xf32> to vector<256x128xf32>
    %9 = arith.addf %6, %8 : vector<256x128xf32>
    %c0_10 = arith.constant 0 : index
    %c0_11 = arith.constant 0 : index
    %10 = vector.load %arg7[%c0_10, %c0_11] : memref<256x128xf32, #tpu.memory_space<vmem>>, vector<256x128xf32>
    tpu.vector_store %arg7[%c0_10, %c0_11], %9 {strides = array<i32>} : memref<256x128xf32, #tpu.memory_space<vmem>>, vector<256x128xf32>,
    return
  }
  func.func @transform_0(%arg0: i32, %arg1: i32) -> (i32, i32) {
    %c0_i32 = arith.constant 0 : i32
    %c0_i32_0 = arith.constant 0 : i32
    return %arg0, %c0_i32 : i32, i32
  }
  func.func @transform_1(%arg0: i32, %arg1: i32) -> (i32, i32) {
    %c0_i32 = arith.constant 0 : i32
    %c0_i32_0 = arith.constant 0 : i32
    return %arg0, %c0_i32 : i32, i32
  }
  func.func @transform_2(%arg0: i32, %arg1: i32) -> (i32, i32) {
    %c0_i32 = arith.constant 0 : i32
    %c0_i32_0 = arith.constant 0 : i32
    return %c0_i32, %arg1 : i32, i32
  }
  func.func @transform_3(%arg0: i32, %arg1: i32) -> (i32, i32) {
    %c0_i32 = arith.constant 0 : i32
    %c0_i32_0 = arith.constant 0 : i32
    return %c0_i32, %arg1 : i32, i32
  }
  func.func @transform_4(%arg0: i32, %arg1: i32) -> (i32, i32) {
    %c0_i32 = arith.constant 0 : i32
    %c0_i32_0 = arith.constant 0 : i32
    return %c0_i32, %arg1 : i32, i32
  }
  func.func @transform_5(%arg0: i32, %arg1: i32) -> (i32, i32) {
    %c0_i32 = arith.constant 0 : i32
    return %arg0, %arg1 : i32, i32
  }
}

</mosaic_0001>

<llo_original>
// kernel: tile.8
$region0: #{tile.8}
  #allocation0 [shape = 's32[1]{0}', space=sflag, size = 0x4, scoped, tag = 'scoped memory for tile.8']
  %s0 = inlined_call_operand.vmem [shape: f32[16], index: 0, kind: input, shape index: {}]
  %s1 = inlined_call_operand.vmem [shape: f32[8,16], index: 1, kind: output, shape index: {}]
  // Predicated region
  $region2: #{tile.8} parent=0 // pred_check
    _
  $region3: #{tile.8} parent=0 // pred_check_branch
    %3 = sbr.rel (0) target = $region5
  $region4: #{tile.8} parent=0 // pred_region
    _
  $region5: #{tile.8} parent=0 // pred_fallthru
    _
  %v4 = vld [vmem:[%s0] ss:$0 sm:$0xff]
  %5 = vst [vmem:[%s1] sm:$0xff] %v4

// kernel: tile.9
$region0: #{tile.9}
  %s0 = inlined_call_operand.vmem [shape: f32[8,16], index: 0, kind: input, shape index: {}]
  %s1 = inlined_call_operand.vmem [shape: f32[1,128], index: 1, kind: output, shape index: {}]
  $region1: #{tile.9} parent=0
    #allocation0 [shape = 'u8[4096]{0}', space=vmem, size = 0x1000, scoped, tag = 'scoped mem for output reshape']
    %v2 = vld [vmem:[%s0] sm:$0x1]
    %vm3 = vcmask 130048
    %4 = vst.msk [vmem:[#allocation0] sm:$0x1] %vm3, %v2
    %s5 = scalar_lea.vmem %s0, 7
    %v6 = vld [vmem:[%s5] sm:$0x1]
    %7 = vrot.lane.b32.xlu0 %v6, 112
    %v8 = vpop.permute.xlu0 %7
    %vm9 = vcmask 1048448
    %10 = vst.msk [vmem:[#allocation0] sm:$0x1] %vm9, %v8
    %s11 = scalar_lea.vmem %s0, 6
    %v12 = vld [vmem:[%s11] sm:$0x1]
    %13 = vrot.lane.b32.xlu0 %v12, 96
    %v14 = vpop.permute.xlu0 %13
    %vm15 = vcmask 917248
    %16 = vst.msk [vmem:[#allocation0] sm:$0x1] %vm15, %v14
    %s17 = scalar_lea.vmem %s0, 5
    %v18 = vld [vmem:[%s17] sm:$0x1]
    %19 = vrot.lane.b32.xlu0 %v18, 80
    %v20 = vpop.permute.xlu0 %19
    %vm21 = vcmask 786048
    %22 = vst.msk [vmem:[#allocation0] sm:$0x1] %vm21, %v20
    %s23 = scalar_lea.vmem %s0, 4
    %v24 = vld [vmem:[%s23] sm:$0x1]
    %25 = vrot.lane.b32.xlu0 %v24, 64
    %v26 = vpop.permute.xlu0 %25
    %vm27 = vcmask 654848
    %28 = vst.msk [vmem:[#allocation0] sm:$0x1] %vm27, %v26
    %s29 = scalar_lea.vmem %s0, 3
    %v30 = vld [vmem:[%s29] sm:$0x1]
    %31 = vrot.lane.b32.xlu0 %v30, 48
    %v32 = vpop.permute.xlu0 %31
    %vm33 = vcmask 523648
    %34 = vst.msk [vmem:[#allocation0] sm:$0x1] %vm33, %v32
    %s35 = scalar_lea.vmem %s0, 2
    %v36 = vld [vmem:[%s35] sm:$0x1]
    %37 = vrot.lane.b32.xlu0 %v36, 32
    %v38 = vpop.permute.xlu0 %37
    %vm39 = vcmask 392448
    %40 = vst.msk [vmem:[#allocation0] sm:$0x1] %vm39, %v38
    %s41 = scalar_lea.vmem %s0, 1
    %v42 = vld [vmem:[%s41] sm:$0x1]
    %43 = vrot.lane.b32.xlu0 %v42, 16
    %v44 = vpop.permute.xlu0 %43
    %vm45 = vcmask 261248
    %46 = vst.msk [vmem:[#allocation0] sm:$0x1] %vm45, %v44
    %s48 = sshllo.u32 0, 1
    %v50 = vld [vmem:[#allocation0] sm:%s48]
    %s51 = sshllo.u32 0, 1
    %52 = vst [vmem:[%s1] sm:%s51] %v50

// kernel: affine_dynamics_forward.1
$region0: #{affine_dynamics_forward.1}
  #allocation0 [shape = 'u32[]', space=smem, size = 0x4, offset = 0x4, fixed_abs, tag = 'smem constant byte address 0x4 - core index']
  #allocation1 [shape = 'u32[144,128]{1,0:T(1,128)}', space=vmem, size = 0x12000, scoped, tag = 'internal scratch']
  %s0 = inlined_call_operand.vmem [shape: f32[1024,128], index: 0, kind: input, shape index: {}]
  %s1 = inlined_call_operand.vmem [shape: f32[1024,64], index: 1, kind: input, shape index: {}]
  %s2 = inlined_call_operand.vmem [shape: f32[128,128], index: 2, kind: input, shape index: {}]
  %s3 = inlined_call_operand.vmem [shape: f32[64,128], index: 3, kind: input, shape index: {}]
  %s4 = inlined_call_operand.vmem [shape: f32[1,128], index: 4, kind: input, shape index: {}]
  %s5 = inlined_call_operand.vmem [shape: f32[1024,128], index: 5, kind: output, shape index: {}]
  %s6 = sld [smem:[#allocation0]]
  $region53: #{affine_dynamics_forward.1} parent=0
    _
  %s8 = ssub.s32 1, %s6
  %s9 = scalar_select 0, %s8, %s6
  loop: start=0, step=1, limit=6
  $region2: #{affine_dynamics_forward.1} parent=0 // loop_pre_header
    _
  $region3: #{affine_dynamics_forward.1} parent=0 // loop_header
    %s11 = sphi 0, %s15
    %p12 = scmp.ge.s32.totalorder %s11, 6
    %s18 = sphi 0, %s30
    %s19 = sphi 0, %s26
    %s20 = sphi 0, %s18
    %s21 = sphi 0, %s19
    %s22 = sphi 0, %s20
    %s23 = sphi 0, %s21
    %s33 = sphi 0, %s35
    %s36 = sphi 0, %s33
    %s37 = sphi 0, %s36
    %s53 = sphi 0, %s37
    %s59 = sphi 0, %s61
    %s62 = sphi 0, %s59
    %s63 = sphi 0, %s62
    %s79 = sphi 0, %s63
    %s85 = sphi 0, %s87
    %s88 = sphi 0, %s85
    %s89 = sphi 0, %s88
    %s105 = sphi 0, %s89
    %s111 = sphi 0, %s113
    %s114 = sphi 0, %s111
    %s115 = sphi 0, %s114
    %s131 = sphi 0, %s115
    %s137 = sphi 0, %s139
    %s140 = sphi 0, %s137
    %s141 = sphi 0, %s140
    %s157 = sphi 0, %s141
    %s165 = sphi 0, %s167
    %s168 = sphi 0, %s165
    %s169 = sphi 0, %s168
    %s185 = sphi 0, %s169
  $region4: #{affine_dynamics_forward.1} parent=0 // loop_header_branch
    %14 = sbr.rel (%p12) target = $region8
  $region5: #{affine_dynamics_forward.1} parent=0 // loop_body
    %s16 = ssub.s32 %s11, 1
    %s17 = ssub.s32 %s11, 2
    %s24 = sadd.s32 1, %s19
    %p25 = scmp.ge.s32.totalorder %s24, 1
    %s26 = scalar_select %p25, 0, %s24
    %s27 = sadd.s32 1, %s18
    %s28 = scalar_select %p25, %s27, %s18
    %p29 = scmp.ge.s32.totalorder %s28, 4
    %s30 = scalar_select %p29, 0, %s28
    %s31 = ssub.s32 %s18, %s30
    %p32 = scmp.eq.s32.totalorder %s31, 0
    %s34 = sadd.s32 %s33, 1
    %s35 = scalar_select %p32, %s33, %s34
    %p38 = pneg %p32
    %p39 = scmp.eq.s32.totalorder %s11, 3
    %p40 = por %p38, %p39
    %p41 = scmp.ne.s32.totalorder %s33, %s36
    %p42 = scmp.eq.s32.totalorder %s11, 0
    %p43 = por %p41, %p42
    %p44 = scmp.ne.s32.totalorder %s33, %s36
    %p45 = scmp.eq.s32.totalorder %s16, 3
    %p46 = por %p44, %p45
    %p47 = scmp.ne.s32.totalorder %s36, %s37
    %p48 = scmp.eq.s32.totalorder %s16, 0
    %p49 = por %p47, %p48
    %p50 = scmp.ne.s32.totalorder %s36, %s37
    %p51 = scmp.eq.s32.totalorder %s17, 3
    %p52 = por %p50, %p51
    %p54 = scmp.ne.s32.totalorder %s37, %s53
    %p55 = scmp.eq.s32.totalorder %s17, 0
    %p56 = por %p54, %p55
    %s57 = ssub.s32 %s18, %s30
    %p58 = scmp.eq.s32.totalorder %s57, 0
    %s60 = sadd.s32 %s59, 1
    %s61 = scalar_select %p58, %s59, %s60
    %p64 = pneg %p58
    %p65 = scmp.eq.s32.totalorder %s11, 3
    %p66 = por %p64, %p65
    %p67 = scmp.ne.s32.totalorder %s59, %s62
    %p68 = scmp.eq.s32.totalorder %s11, 0
    %p69 = por %p67, %p68
    %p70 = scmp.ne.s32.totalorder %s59, %s62
    %p71 = scmp.eq.s32.totalorder %s16, 3
    %p72 = por %p70, %p71
    %p73 = scmp.ne.s32.totalorder %s62, %s63
    %p74 = scmp.eq.s32.totalorder %s16, 0
    %p75 = por %p73, %p74
    %p76 = scmp.ne.s32.totalorder %s62, %s63
    %p77 = scmp.eq.s32.totalorder %s17, 3
    %p78 = por %p76, %p77
    %p80 = scmp.ne.s32.totalorder %s63, %s79
    %p81 = scmp.eq.s32.totalorder %s17, 0
    %p82 = por %p80, %p81
    %s83 = ssub.s32 %s19, %s26
    %p84 = scmp.eq.s32.totalorder %s83, 0
    %s86 = sadd.s32 %s85, 1
    %s87 = scalar_select %p84, %s85, %s86
    %p90 = pneg %p84
    %p91 = scmp.eq.s32.totalorder %s11, 3
    %p92 = por %p90, %p91
    %p93 = scmp.ne.s32.totalorder %s85, %s88
    %p94 = scmp.eq.s32.totalorder %s11, 0
    %p95 = por %p93, %p94
    %p96 = scmp.ne.s32.totalorder %s85, %s88
    %p97 = scmp.eq.s32.totalorder %s16, 3
    %p98 = por %p96, %p97
    %p99 = scmp.ne.s32.totalorder %s88, %s89
    %p100 = scmp.eq.s32.totalorder %s16, 0
    %p101 = por %p99, %p100
    %p102 = scmp.ne.s32.totalorder %s88, %s89
    %p103 = scmp.eq.s32.totalorder %s17, 3
    %p104 = por %p102, %p103
    %p106 = scmp.ne.s32.totalorder %s89, %s105
    %p107 = scmp.eq.s32.totalorder %s17, 0
    %p108 = por %p106, %p107
    %s109 = ssub.s32 %s19, %s26
    %p110 = scmp.eq.s32.totalorder %s109, 0
    %s112 = sadd.s32 %s111, 1
    %s113 = scalar_select %p110, %s111, %s112
    %p116 = pneg %p110
    %p117 = scmp.eq.s32.totalorder %s11, 3
    %p118 = por %p116, %p117
    %p119 = scmp.ne.s32.totalorder %s111, %s114
    %p120 = scmp.eq.s32.totalorder %s11, 0
    %p121 = por %p119, %p120
    %p122 = scmp.ne.s32.totalorder %s111, %s114
    %p123 = scmp.eq.s32.totalorder %s16, 3
    %p124 = por %p122, %p123
    %p125 = scmp.ne.s32.totalorder %s114, %s115
    %p126 = scmp.eq.s32.totalorder %s16, 0
    %p127 = por %p125, %p126
    %p128 = scmp.ne.s32.totalorder %s114, %s115
    %p129 = scmp.eq.s32.totalorder %s17, 3
    %p130 = por %p128, %p129
    %p132 = scmp.ne.s32.totalorder %s115, %s131
    %p133 = scmp.eq.s32.totalorder %s17, 0
    %p134 = por %p132, %p133
    %s135 = ssub.s32 %s19, %s26
    %p136 = scmp.eq.s32.totalorder %s135, 0
    %s138 = sadd.s32 %s137, 1
    %s139 = scalar_select %p136, %s137, %s138
    %p142 = pneg %p136
    %p143 = scmp.eq.s32.totalorder %s11, 3
    %p144 = por %p142, %p143
    %p145 = scmp.ne.s32.totalorder %s137, %s140
    %p146 = scmp.eq.s32.totalorder %s11, 0
    %p147 = por %p145, %p146
    %p148 = scmp.ne.s32.totalorder %s137, %s140
    %p149 = scmp.eq.s32.totalorder %s16, 3
    %p150 = por %p148, %p149
    %p151 = scmp.ne.s32.totalorder %s140, %s141
    %p152 = scmp.eq.s32.totalorder %s16, 0
    %p153 = por %p151, %p152
    %p154 = scmp.ne.s32.totalorder %s140, %s141
    %p155 = scmp.eq.s32.totalorder %s17, 3
    %p156 = por %p154, %p155
    %p158 = scmp.ne.s32.totalorder %s141, %s157
    %p159 = scmp.eq.s32.totalorder %s17, 0
    %p160 = por %p158, %p159
    %s161 = ssub.s32 %s18, %s30
    %s162 = ssub.s32 %s19, %s26
    %s163 = sor.u32 %s161, %s162
    %p164 = scmp.eq.s32.totalorder %s163, 0
    %s166 = sadd.s32 %s165, 1
    %s167 = scalar_select %p164, %s165, %s166
    %p170 = pneg %p164
    %p171 = scmp.eq.s32.totalorder %s11, 3
    %p172 = por %p170, %p171
    %p173 = scmp.ne.s32.totalorder %s165, %s168
    %p174 = scmp.eq.s32.totalorder %s11, 0
    %p175 = por %p173, %p174
    %p176 = scmp.ne.s32.totalorder %s165, %s168
    %p177 = scmp.eq.s32.totalorder %s16, 3
    %p178 = por %p176, %p177
    %p179 = scmp.ne.s32.totalorder %s168, %s169
    %p180 = scmp.eq.s32.totalorder %s16, 0
    %p181 = por %p179, %p180
    %p182 = scmp.ne.s32.totalorder %s168, %s169
    %p183 = scmp.eq.s32.totalorder %s17, 3
    %p184 = por %p182, %p183
    %p186 = scmp.ne.s32.totalorder %s169, %s185
    %p187 = scmp.eq.s32.totalorder %s17, 0
    %p188 = por %p186, %p187
    %p189 = scmp.le.s32.totalorder 1, %s11
    %p190 = scmp.lt.s32.totalorder %s11, 5
    %p191 = pnand %p189, %p190
    %p192 = pneg %p191
    // Predicated region
    $region9: #{affine_dynamics_forward.1} parent=5 // pred_check
      _
    $region10: #{affine_dynamics_forward.1} parent=5 // pred_check_branch
      %194 = sbr.rel (%p191) target = $region12
    $region11: #{affine_dynamics_forward.1} parent=5 // pred_region
      %s195 = ssub.s32 %s11, 1
      // Predicated region
      $region13: #{affine_dynamics_forward.1} parent=11 // pred_check
        %p196 = pneg %p101
      $region14: #{affine_dynamics_forward.1} parent=11 // pred_check_branch
        %198 = sbr.rel (%p196) target = $region16
      $region15: #{affine_dynamics_forward.1} parent=11 // pred_region
        %p199 = scmp.lt.s32.totalorder %s21, 0
        %s200 = scalar_select %p199, %s21, 0
        %s201 = smul.addr %s200, 8
        %s202 = scalar_lea.vmem %s2, %s201
      $region16: #{affine_dynamics_forward.1} parent=11 // pred_fallthru
        _
      // Predicated region
      $region17: #{affine_dynamics_forward.1} parent=11 // pred_check
        %p203 = pneg %p127
      $region18: #{affine_dynamics_forward.1} parent=11 // pred_check_branch
        %205 = sbr.rel (%p203) target = $region20
      $region19: #{affine_dynamics_forward.1} parent=11 // pred_region
        %p206 = scmp.lt.s32.totalorder %s21, 0
        %s207 = scalar_select %p206, %s21, 0
        %s208 = smul.addr %s207, 8
        %s209 = scalar_lea.vmem %s3, %s208
      $region20: #{affine_dynamics_forward.1} parent=11 // pred_fallthru
        _
      // Predicated region
      $region21: #{affine_dynamics_forward.1} parent=11 // pred_check
        %p210 = pneg %p153
      $region22: #{affine_dynamics_forward.1} parent=11 // pred_check_branch
        %212 = sbr.rel (%p210) target = $region24
      $region23: #{affine_dynamics_forward.1} parent=11 // pred_region
        %p213 = scmp.lt.s32.totalorder %s21, 0
        %s214 = scalar_select %p213, %s21, 0
        %s215 = scalar_lea.vmem %s4, %s214
      $region24: #{affine_dynamics_forward.1} parent=11 // pred_fallthru
        _
    $region12: #{affine_dynamics_forward.1} parent=5 // pred_fallthru
      _
    %p216 = scmp.lt.s32.totalorder %s11, 4
    // Predicated region
    $region25: #{affine_dynamics_forward.1} parent=5 // pred_check
      %p217 = pneg %p216
    $region26: #{affine_dynamics_forward.1} parent=5 // pred_check_branch
      %219 = sbr.rel (%p217) target = $region28
    $region27: #{affine_dynamics_forward.1} parent=5 // pred_region
      // Predicated region
      $region29: #{affine_dynamics_forward.1} parent=27 // pred_check
        %p220 = pneg %p43
      $region30: #{affine_dynamics_forward.1} parent=27 // pred_check_branch
        %222 = sbr.rel (%p220) target = $region32
      $region31: #{affine_dynamics_forward.1} parent=27 // pred_region
        %s223 = smul.u32 32, %s18
        %p224 = scmp.lt.s32.totalorder %s223, 127
        %s225 = scalar_select %p224, %s223, 127
        %s226 = smul.addr %s225, 8
        %s227 = scalar_lea.vmem %s0, %s226
        %s228 = smul.u32 32, %s18
      $region32: #{affine_dynamics_forward.1} parent=27 // pred_fallthru
        _
      // Predicated region
      $region33: #{affine_dynamics_forward.1} parent=27 // pred_check
        %p229 = pneg %p69
      $region34: #{affine_dynamics_forward.1} parent=27 // pred_check_branch
        %231 = sbr.rel (%p229) target = $region36
      $region35: #{affine_dynamics_forward.1} parent=27 // pred_region
        %s232 = smul.u32 32, %s18
        %p233 = scmp.lt.s32.totalorder %s232, 127
        %s234 = scalar_select %p233, %s232, 127
        %s235 = smul.addr %s234, 8
        %s236 = scalar_lea.vmem %s1, %s235
        %s237 = smul.u32 32, %s18
      $region36: #{affine_dynamics_forward.1} parent=27 // pred_fallthru
        _
    $region28: #{affine_dynamics_forward.1} parent=5 // pred_fallthru
      _
    %p238 = scmp.le.s32.totalorder 1, %s11
    %p239 = scmp.lt.s32.totalorder %s11, 5
    %p240 = pnand %p238, %p239
    %p241 = pneg %p240
    // Predicated region
    $region37: #{affine_dynamics_forward.1} parent=5 // pred_check
      _
    $region38: #{affine_dynamics_forward.1} parent=5 // pred_check_branch
      %243 = sbr.rel (%p240) target = $region40
    $region39: #{affine_dynamics_forward.1} parent=5 // pred_region
      %s244 = ssub.s32 %s11, 1
      %s245 = smul.u32 32, %s20
      %p246 = scmp.lt.s32.totalorder %s245, 127
      %s247 = scalar_select %p246, %s245, 127
      %s248 = smul.addr %s247, 8
      %s249 = scalar_lea.vmem %s0, %s248
      %p250 = pneg %p49
      %p251 = pneg %p46
      %s252 = smul.u32 32, %s20
      %p253 = scmp.lt.s32.totalorder %s252, 127
      %s254 = scalar_select %p253, %s252, 127
      %s255 = smul.addr %s254, 8
      %s256 = scalar_lea.vmem %s1, %s255
      %p257 = pneg %p75
      %p258 = pneg %p72
      %p259 = scmp.lt.s32.totalorder %s21, 0
      %s260 = scalar_select %p259, %s21, 0
      %s261 = smul.addr %s260, 8
      %s262 = scalar_lea.vmem %s2, %s261
      %p263 = pneg %p101
      %p264 = pneg %p98
      %p265 = scmp.lt.s32.totalorder %s21, 0
      %s266 = scalar_select %p265, %s21, 0
      %s267 = smul.addr %s266, 8
      %s268 = scalar_lea.vmem %s3, %s267
      %p269 = pneg %p127
      %p270 = pneg %p124
      %p271 = scmp.lt.s32.totalorder %s21, 0
      %s272 = scalar_select %p271, %s21, 0
      %s273 = scalar_lea.vmem %s4, %s272
      %p274 = pneg %p153
      %p275 = pneg %p150
      %p276 = pneg %p181
      %p277 = pneg %p178
      %s278 = smul.u32 32, %s20
      %p279 = scmp.lt.s32.totalorder %s278, 127
      %s280 = scalar_select %p279, %s278, 127
      %p281 = scmp.lt.s32.totalorder %s21, 0
      %s282 = scalar_select %p281, %s21, 0
      %s283 = sadd.s32 %s282, %s280
      %s284 = smul.addr %s283, 8
      %s285 = scalar_lea.vmem %s5, %s284
      %s286 = smul.u32 32, %s20
      %p287 = scmp.lt.s32.totalorder %s286, 127
      %s288 = scalar_select %p287, %s286, 127
      %s289 = smul.addr %s288, 8
      %s290 = scalar_lea.vmem %s0, %s289
      %s291 = smul.u32 32, %s20
      %s292 = smul.u32 32, %s20
      %p293 = scmp.lt.s32.totalorder %s292, 127
      %s294 = scalar_select %p293, %s292, 127
      %s295 = smul.addr %s294, 8
      %s296 = scalar_lea.vmem %s1, %s295
      %s297 = smul.u32 32, %s20
      %p298 = scmp.lt.s32.totalorder %s21, 0
      %s299 = scalar_select %p298, %s21, 0
      %s300 = smul.addr %s299, 8
      %s301 = scalar_lea.vmem %s2, %s300
      %p302 = scmp.lt.s32.totalorder %s21, 0
      %s303 = scalar_select %p302, %s21, 0
      %s304 = smul.addr %s303, 8
      %s305 = scalar_lea.vmem %s3, %s304
      %p306 = scmp.lt.s32.totalorder %s21, 0
      %s307 = scalar_select %p306, %s21, 0
      %s308 = scalar_lea.vmem %s4, %s307
      %s309 = smul.u32 32, %s20
      %p310 = scmp.lt.s32.totalorder %s309, 127
      %s311 = scalar_select %p310, %s309, 127
      %p312 = scmp.lt.s32.totalorder %s21, 0
      %s313 = scalar_select %p312, %s21, 0
      %s314 = sadd.s32 %s313, %s311
      %s315 = smul.addr %s314, 8
      %s316 = scalar_lea.vmem %s5, %s315
      %s317 = smul.u32 32, %s20
      %v318 = vld [vmem:[%s290] sm:$0xff]
      %v319 = vld [vmem:[%s290 + $0x8] sm:$0xff]
      %v320 = vld [vmem:[%s290 + $0x10] sm:$0xff]
      %v321 = vld [vmem:[%s290 + $0x18] sm:$0xff]
      %v322 = vld [vmem:[%s290 + $0x20] sm:$0xff]
      %v323 = vld [vmem:[%s290 + $0x28] sm:$0xff]
      %v324 = vld [vmem:[%s290 + $0x30] sm:$0xff]
      %v325 = vld [vmem:[%s290 + $0x38] sm:$0xff]
      %v326 = vld [vmem:[%s290 + $0x40] sm:$0xff]
      %v327 = vld [vmem:[%s290 + $0x48] sm:$0xff]
      %v328 = vld [vmem:[%s290 + $0x50] sm:$0xff]
      %v329 = vld [vmem:[%s290 + $0x58] sm:$0xff]
      %v330 = vld [vmem:[%s290 + $0x60] sm:$0xff]
      %v331 = vld [vmem:[%s290 + $0x68] sm:$0xff]
      %v332 = vld [vmem:[%s290 + $0x70] sm:$0xff]
      %v333 = vld [vmem:[%s290 + $0x78] sm:$0xff]
      %v334 = vld [vmem:[%s290 + $0x80] sm:$0xff]
      %v335 = vld [vmem:[%s290 + $0x88] sm:$0xff]
      %v336 = vld [vmem:[%s290 + $0x90] sm:$0xff]
      %v337 = vld [vmem:[%s290 + $0x98] sm:$0xff]
      %v338 = vld [vmem:[%s290 + $0xa0] sm:$0xff]
      %v339 = vld [vmem:[%s290 + $0xa8] sm:$0xff]
      %v340 = vld [vmem:[%s290 + $0xb0] sm:$0xff]
      %v341 = vld [vmem:[%s290 + $0xb8] sm:$0xff]
      %v342 = vld [vmem:[%s290 + $0xc0] sm:$0xff]
      %v343 = vld [vmem:[%s290 + $0xc8] sm:$0xff]
      %v344 = vld [vmem:[%s290 + $0xd0] sm:$0xff]
      %v345 = vld [vmem:[%s290 + $0xd8] sm:$0xff]
      %v346 = vld [vmem:[%s290 + $0xe0] sm:$0xff]
      %v347 = vld [vmem:[%s290 + $0xe8] sm:$0xff]
      %v348 = vld [vmem:[%s290 + $0xf0] sm:$0xff]
      %v349 = vld [vmem:[%s290 + $0xf8] sm:$0xff]
      %v350 = vld [vmem:[%s301] sm:$0xff]
      %v351 = vld [vmem:[%s301 + $0x8] sm:$0xff]
      %v352 = vld [vmem:[%s301 + $0x10] sm:$0xff]
      %v353 = vld [vmem:[%s301 + $0x18] sm:$0xff]
      %v354 = vld [vmem:[%s301 + $0x20] sm:$0xff]
      %v355 = vld [vmem:[%s301 + $0x28] sm:$0xff]
      %v356 = vld [vmem:[%s301 + $0x30] sm:$0xff]
      %v357 = vld [vmem:[%s301 + $0x38] sm:$0xff]
      %v358 = vld [vmem:[%s301 + $0x40] sm:$0xff]
      %v359 = vld [vmem:[%s301 + $0x48] sm:$0xff]
      %v360 = vld [vmem:[%s301 + $0x50] sm:$0xff]
      %v361 = vld [vmem:[%s301 + $0x58] sm:$0xff]
      %v362 = vld [vmem:[%s301 + $0x60] sm:$0xff]
      %v363 = vld [vmem:[%s301 + $0x68] sm:$0xff]
      %v364 = vld [vmem:[%s301 + $0x70] sm:$0xff]
      %v365 = vld [vmem:[%s301 + $0x78] sm:$0xff]
      %v366 = vld [vmem:[%s296] sm:$0xff]
      %v367 = vld [vmem:[%s296 + $0x8] sm:$0xff]
      %v368 = vld [vmem:[%s296 + $0x10] sm:$0xff]
      %v369 = vld [vmem:[%s296 + $0x18] sm:$0xff]
      %v370 = vld [vmem:[%s296 + $0x20] sm:$0xff]
      %v371 = vld [vmem:[%s296 + $0x28] sm:$0xff]
      %v372 = vld [vmem:[%s296 + $0x30] sm:$0xff]
      %v373 = vld [vmem:[%s296 + $0x38] sm:$0xff]
      %v374 = vld [vmem:[%s296 + $0x40] sm:$0xff]
      %v375 = vld [vmem:[%s296 + $0x48] sm:$0xff]
      %v376 = vld [vmem:[%s296 + $0x50] sm:$0xff]
      %v377 = vld [vmem:[%s296 + $0x58] sm:$0xff]
      %v378 = vld [vmem:[%s296 + $0x60] sm:$0xff]
      %v379 = vld [vmem:[%s296 + $0x68] sm:$0xff]
      %v380 = vld [vmem:[%s296 + $0x70] sm:$0xff]
      %v381 = vld [vmem:[%s296 + $0x78] sm:$0xff]
      %v382 = vld [vmem:[%s296 + $0x80] sm:$0xff]
      %v383 = vld [vmem:[%s296 + $0x88] sm:$0xff]
      %v384 = vld [vmem:[%s296 + $0x90] sm:$0xff]
      %v385 = vld [vmem:[%s296 + $0x98] sm:$0xff]
      %v386 = vld [vmem:[%s296 + $0xa0] sm:$0xff]
      %v387 = vld [vmem:[%s296 + $0xa8] sm:$0xff]
      %v388 = vld [vmem:[%s296 + $0xb0] sm:$0xff]
      %v389 = vld [vmem:[%s296 + $0xb8] sm:$0xff]
      %v390 = vld [vmem:[%s296 + $0xc0] sm:$0xff]
      %v391 = vld [vmem:[%s296 + $0xc8] sm:$0xff]
      %v392 = vld [vmem:[%s296 + $0xd0] sm:$0xff]
      %v393 = vld [vmem:[%s296 + $0xd8] sm:$0xff]
      %v394 = vld [vmem:[%s296 + $0xe0] sm:$0xff]
      %v395 = vld [vmem:[%s296 + $0xe8] sm:$0xff]
      %v396 = vld [vmem:[%s296 + $0xf0] sm:$0xff]
      %v397 = vld [vmem:[%s296 + $0xf8] sm:$0xff]
      %v398 = vld [vmem:[%s305] sm:$0xff]
      %v399 = vld [vmem:[%s305 + $0x8] sm:$0xff]
      %v400 = vld [vmem:[%s305 + $0x10] sm:$0xff]
      %v401 = vld [vmem:[%s305 + $0x18] sm:$0xff]
      %v402 = vld [vmem:[%s305 + $0x20] sm:$0xff]
      %v403 = vld [vmem:[%s305 + $0x28] sm:$0xff]
      %v404 = vld [vmem:[%s305 + $0x30] sm:$0xff]
      %v405 = vld [vmem:[%s305 + $0x38] sm:$0xff]
      %vm406 = vcmask 523264
      %v408 = vsel %vm406, %v366, 0
      %v411 = vsel %vm406, %v367, 0
      %v414 = vsel %vm406, %v368, 0
      %v417 = vsel %vm406, %v369, 0
      %v420 = vsel %vm406, %v370, 0
      %v423 = vsel %vm406, %v371, 0
      %v426 = vsel %vm406, %v372, 0
      %v429 = vsel %vm406, %v373, 0
      %v432 = vsel %vm406, %v374, 0
      %v435 = vsel %vm406, %v375, 0
      %v438 = vsel %vm406, %v376, 0
      %v441 = vsel %vm406, %v377, 0
      %v444 = vsel %vm406, %v378, 0
      %v447 = vsel %vm406, %v379, 0
      %v450 = vsel %vm406, %v380, 0
      %v453 = vsel %vm406, %v381, 0
      %v456 = vsel %vm406, %v382, 0
      %v459 = vsel %vm406, %v383, 0
      %v462 = vsel %vm406, %v384, 0
      %v465 = vsel %vm406, %v385, 0
      %v468 = vsel %vm406, %v386, 0
      %v471 = vsel %vm406, %v387, 0
      %v474 = vsel %vm406, %v388, 0
      %v477 = vsel %vm406, %v389, 0
      %v480 = vsel %vm406, %v390, 0
      %v483 = vsel %vm406, %v391, 0
      %v486 = vsel %vm406, %v392, 0
      %v489 = vsel %vm406, %v393, 0
      %v492 = vsel %vm406, %v394, 0
      %v495 = vsel %vm406, %v395, 0
      %v498 = vsel %vm406, %v396, 0
      %v501 = vsel %vm406, %v397, 0
      %503 = vmatprep.subr.mxu0 0.0
      %504 = vmatpush1.msra.mxu0 %v398
      %505 = vmatprep.subr.mxu0 0.0
      %506 = vmatpush1.msra.mxu0 %v399
      %507 = vmatprep.subr.mxu0 0.0
      %508 = vmatpush1.msra.mxu0 %v400
      %509 = vmatprep.subr.mxu0 0.0
      %510 = vmatpush1.msra.mxu0 %v401
      %511 = vmatprep.subr.mxu0 0.0
      %512 = vmatpush1.msra.mxu0 %v402
      %513 = vmatprep.subr.mxu0 0.0
      %514 = vmatpush1.msra.mxu0 %v403
      %515 = vmatprep.subr.mxu0 0.0
      %516 = vmatpush1.msra.mxu0 %v404
      %517 = vmatprep.subr.mxu0 0.0
      %518 = vmatpush1.msra.mxu0 %v405
      %519 = vmatprep.subr.mxu0 0.0
      %520 = vmatpush1.msra.mxu0 0.0
      %521 = vmatprep.subr.mxu0 0.0
      %522 = vmatpush1.msra.mxu0 0.0
      %523 = vmatprep.subr.mxu0 0.0
      %524 = vmatpush1.msra.mxu0 0.0
      %525 = vmatprep.subr.mxu0 0.0
      %526 = vmatpush1.msra.mxu0 0.0
      %527 = vmatprep.subr.mxu0 0.0
      %528 = vmatpush1.msra.mxu0 0.0
      %529 = vmatprep.subr.mxu0 0.0
      %530 = vmatpush1.msra.mxu0 0.0
      %531 = vmatprep.subr.mxu0 0.0
      %532 = vmatpush1.msra.mxu0 0.0
      %533 = vmatprep.subr.mxu0 0.0
      %534 = vmatpush1.msra.mxu0 0.0
      %535 = vmatprep.subr.mxu0 0.0
      %536 = vmatpush1.msra.mxu0 0.0
      %537 = vmatprep.subr.mxu0 0.0
      %538 = vmatpush1.msra.mxu0 0.0
      %539 = vmatprep.subr.mxu0 0.0
      %540 = vmatpush1.msra.mxu0 0.0
      %541 = vmatprep.subr.mxu0 0.0
      %542 = vmatpush1.msra.mxu0 0.0
      %543 = vmatprep.subr.mxu0 0.0
      %544 = vmatpush1.msra.mxu0 0.0
      %545 = vmatprep.subr.mxu0 0.0
      %546 = vmatpush1.msra.mxu0 0.0
      %547 = vmatprep.subr.mxu0 0.0
      %548 = vmatpush1.msra.mxu0 0.0
      %549 = vmatprep.subr.mxu0 0.0
      %550 = vmatpush1.msra.mxu0 0.0
      %551 = vmatprep.subr.mxu0 0.0
      %552 = vmatpush1.msra.mxu0 0.0
      %553 = vmatprep.subr.mxu0 0.0
      %554 = vmatpush1.msra.mxu0 0.0
      %555 = vmatprep.subr.mxu0 0.0
      %556 = vmatpush1.msra.mxu0 0.0
      %557 = vmatprep.subr.mxu0 0.0
      %558 = vmatpush1.msra.mxu0 0.0
      %559 = vmatprep.subr.mxu0 0.0
      %560 = vmatpush1.msra.mxu0 0.0
      %561 = vmatprep.subr.mxu0 0.0
      %562 = vmatpush1.msra.mxu0 0.0
      %563 = vmatprep.subr.mxu0 0.0
      %564 = vmatpush1.msra.mxu0 0.0
      %565 = vmatprep.subr.mxu0 0.0
      %566 = vmatpush1.msra.mxu0 0.0
      %567 = vmatprep.mubr.f32.mxu0 0.0
      %568 = vmatmul.mubr.f32.gmra.mrb[0].mxu0 %v408
      %v569 = vpop.f32.mrb[0].mxu0
      %v570 = vadd.f32 0.0, %v569
      %v571 = vpop.f32.mrb[0].mxu0
      %572 = vmatprep.mubr.f32.mxu0 0.0
      %573 = vmatmul.mubr.f32.gmra.mrb[0].mxu0 %v411
      %v574 = vpop.f32.mrb[0].mxu0
      %v575 = vadd.f32 0.0, %v574
      %v576 = vpop.f32.mrb[0].mxu0
      %577 = vmatprep.mubr.f32.mxu0 0.0
      %578 = vmatmul.mubr.f32.gmra.mrb[0].mxu0 %v414
      %v579 = vpop.f32.mrb[0].mxu0
      %v580 = vadd.f32 0.0, %v579
      %v581 = vpop.f32.mrb[0].mxu0
      %582 = vmatprep.mubr.f32.mxu0 0.0
      %583 = vmatmul.mubr.f32.gmra.mrb[0].mxu0 %v417
      %v584 = vpop.f32.mrb[0].mxu0
      %v585 = vadd.f32 0.0, %v584
      %v586 = vpop.f32.mrb[0].mxu0
      %587 = vmatprep.mubr.f32.mxu0 0.0
      %588 = vmatmul.mubr.f32.gmra.mrb[0].mxu0 %v420
      %v589 = vpop.f32.mrb[0].mxu0
      %v590 = vadd.f32 0.0, %v589
      %v591 = vpop.f32.mrb[0].mxu0
      %592 = vmatprep.mubr.f32.mxu0 0.0
      %593 = vmatmul.mubr.f32.gmra.mrb[0].mxu0 %v423
      %v594 = vpop.f32.mrb[0].mxu0
      %v595 = vadd.f32 0.0, %v594
      %v596 = vpop.f32.mrb[0].mxu0
      %597 = vmatprep.mubr.f32.mxu0 0.0
      %598 = vmatmul.mubr.f32.gmra.mrb[0].mxu0 %v426
      %v599 = vpop.f32.mrb[0].mxu0
      %v600 = vadd.f32 0.0, %v599
      %v601 = vpop.f32.mrb[0].mxu0
      %602 = vmatprep.mubr.f32.mxu0 0.0
      %603 = vmatmul.mubr.f32.gmra.mrb[0].mxu0 %v429
      %v604 = vpop.f32.mrb[0].mxu0
      %v605 = vadd.f32 0.0, %v604
      %v606 = vpop.f32.mrb[0].mxu0
      %607 = vmatprep.mubr.f32.mxu0 0.0
      %608 = vmatmul.mubr.f32.gmra.mrb[0].mxu0 %v432
      %v609 = vpop.f32.mrb[0].mxu0
      %v610 = vadd.f32 0.0, %v609
      %v611 = vpop.f32.mrb[0].mxu0
      %612 = vmatprep.mubr.f32.mxu0 0.0
      %613 = vmatmul.mubr.f32.gmra.mrb[0].mxu0 %v435
      %v614 = vpop.f32.mrb[0].mxu0
      %v615 = vadd.f32 0.0, %v614
      %v616 = vpop.f32.mrb[0].mxu0
      %617 = vmatprep.mubr.f32.mxu0 0.0
      %618 = vmatmul.mubr.f32.gmra.mrb[0].mxu0 %v438
      %v619 = vpop.f32.mrb[0].mxu0
      %v620 = vadd.f32 0.0, %v619
      %v621 = vpop.f32.mrb[0].mxu0
      %622 = vmatprep.mubr.f32.mxu0 0.0
      %623 = vmatmul.mubr.f32.gmra.mrb[0].mxu0 %v441
      %v624 = vpop.f32.mrb[0].mxu0
      %v625 = vadd.f32 0.0, %v624
      %v626 = vpop.f32.mrb[0].mxu0
      %627 = vmatprep.mubr.f32.mxu0 0.0
      %628 = vmatmul.mubr.f32.gmra.mrb[0].mxu0 %v444
      %v629 = vpop.f32.mrb[0].mxu0
      %v630 = vadd.f32 0.0, %v629
      %v631 = vpop.f32.mrb[0].mxu0
      %632 = vmatprep.mubr.f32.mxu0 0.0
      %633 = vmatmul.mubr.f32.gmra.mrb[0].mxu0 %v447
      %v634 = vpop.f32.mrb[0].mxu0
      %v635 = vadd.f32 0.0, %v634
      %v636 = vpop.f32.mrb[0].mxu0
      %637 = vmatprep.mubr.f32.mxu0 0.0
      %638 = vmatmul.mubr.f32.gmra.mrb[0].mxu0 %v450
      %v639 = vpop.f32.mrb[0].mxu0
      %v640 = vadd.f32 0.0, %v639
      %v641 = vpop.f32.mrb[0].mxu0
      %642 = vmatprep.mubr.f32.mxu0 0.0
      %643 = vmatmul.mubr.f32.gmra.mrb[0].mxu0 %v453
      %v644 = vpop.f32.mrb[0].mxu0
      %v645 = vadd.f32 0.0, %v644
      %v646 = vpop.f32.mrb[0].mxu0
      %647 = vmatprep.mubr.f32.mxu0 0.0
      %648 = vmatmul.mubr.f32.gmra.mrb[0].mxu0 %v456
      %v649 = vpop.f32.mrb[0].mxu0
      %v650 = vadd.f32 0.0, %v649
      %v651 = vpop.f32.mrb[0].mxu0
      %652 = vmatprep.mubr.f32.mxu0 0.0
      %653 = vmatmul.mubr.f32.gmra.mrb[0].mxu0 %v459
      %v654 = vpop.f32.mrb[0].mxu0
      %v655 = vadd.f32 0.0, %v654
      %v656 = vpop.f32.mrb[0].mxu0
      %657 = vmatprep.mubr.f32.mxu0 0.0
      %658 = vmatmul.mubr.f32.gmra.mrb[0].mxu0 %v462
      %v659 = vpop.f32.mrb[0].mxu0
      %v660 = vadd.f32 0.0, %v659
      %v661 = vpop.f32.mrb[0].mxu0
      %662 = vmatprep.mubr.f32.mxu0 0.0
      %663 = vmatmul.mubr.f32.gmra.mrb[0].mxu0 %v465
      %v664 = vpop.f32.mrb[0].mxu0
      %v665 = vadd.f32 0.0, %v664
      %v666 = vpop.f32.mrb[0].mxu0
      %667 = vmatprep.mubr.f32.mxu0 0.0
      %668 = vmatmul.mubr.f32.gmra.mrb[0].mxu0 %v468
      %v669 = vpop.f32.mrb[0].mxu0
      %v670 = vadd.f32 0.0, %v669
      %v671 = vpop.f32.mrb[0].mxu0
      %672 = vmatprep.mubr.f32.mxu0 0.0
      %673 = vmatmul.mubr.f32.gmra.mrb[0].mxu0 %v471
      %v674 = vpop.f32.mrb[0].mxu0
      %v675 = vadd.f32 0.0, %v674
      %v676 = vpop.f32.mrb[0].mxu0
      %677 = vmatprep.mubr.f32.mxu0 0.0
      %678 = vmatmul.mubr.f32.gmra.mrb[0].mxu0 %v474
      %v679 = vpop.f32.mrb[0].mxu0
      %v680 = vadd.f32 0.0, %v679
      %v681 = vpop.f32.mrb[0].mxu0
      %682 = vmatprep.mubr.f32.mxu0 0.0
      %683 = vmatmul.mubr.f32.gmra.mrb[0].mxu0 %v477
      %v684 = vpop.f32.mrb[0].mxu0
      %v685 = vadd.f32 0.0, %v684
      %v686 = vpop.f32.mrb[0].mxu0
      %687 = vmatprep.mubr.f32.mxu0 0.0
      %688 = vmatmul.mubr.f32.gmra.mrb[0].mxu0 %v480
      %v689 = vpop.f32.mrb[0].mxu0
      %v690 = vadd.f32 0.0, %v689
      %v691 = vpop.f32.mrb[0].mxu0
      %692 = vmatprep.mubr.f32.mxu0 0.0
      %693 = vmatmul.mubr.f32.gmra.mrb[0].mxu0 %v483
      %v694 = vpop.f32.mrb[0].mxu0
      %v695 = vadd.f32 0.0, %v694
      %v696 = vpop.f32.mrb[0].mxu0
      %697 = vmatprep.mubr.f32.mxu0 0.0
      %698 = vmatmul.mubr.f32.gmra.mrb[0].mxu0 %v486
      %v699 = vpop.f32.mrb[0].mxu0
      %v700 = vadd.f32 0.0, %v699
      %v701 = vpop.f32.mrb[0].mxu0
      %702 = vmatprep.mubr.f32.mxu0 0.0
      %703 = vmatmul.mubr.f32.gmra.mrb[0].mxu0 %v489
      %v704 = vpop.f32.mrb[0].mxu0
      %v705 = vadd.f32 0.0, %v704
      %v706 = vpop.f32.mrb[0].mxu0
      %707 = vmatprep.mubr.f32.mxu0 0.0
      %708 = vmatmul.mubr.f32.gmra.mrb[0].mxu0 %v492
      %v709 = vpop.f32.mrb[0].mxu0
      %v710 = vadd.f32 0.0, %v709
      %v711 = vpop.f32.mrb[0].mxu0
      %712 = vmatprep.mubr.f32.mxu0 0.0
      %713 = vmatmul.mubr.f32.gmra.mrb[0].mxu0 %v495
      %v714 = vpop.f32.mrb[0].mxu0
      %v715 = vadd.f32 0.0, %v714
      %v716 = vpop.f32.mrb[0].mxu0
      %717 = vmatprep.mubr.f32.mxu0 0.0
      %718 = vmatmul.mubr.f32.gmra.mrb[0].mxu0 %v498
      %v719 = vpop.f32.mrb[0].mxu0
      %v720 = vadd.f32 0.0, %v719
      %v721 = vpop.f32.mrb[0].mxu0
      %722 = vmatprep.mubr.f32.mxu0 0.0
      %723 = vmatmul.mubr.f32.gmra.mrb[0].mxu0 %v501
      %v724 = vpop.f32.mrb[0].mxu0
      %v725 = vadd.f32 0.0, %v724
      %v726 = vpop.f32.mrb[0].mxu0
      %727 = vdwg.mxu0
      %728 = vmatprep.subr.mxu0 0.0
      %729 = vmatpush1.msra.mxu0 %v350
      %730 = vmatprep.subr.mxu0 0.0
      %731 = vmatpush1.msra.mxu0 %v351
      %732 = vmatprep.subr.mxu0 0.0
      %733 = vmatpush1.msra.mxu0 %v352
      %734 = vmatprep.subr.mxu0 0.0
      %735 = vmatpush1.msra.mxu0 %v353
      %736 = vmatprep.subr.mxu0 0.0
      %737 = vmatpush1.msra.mxu0 %v354
      %738 = vmatprep.subr.mxu0 0.0
      %739 = vmatpush1.msra.mxu0 %v355
      %740 = vmatprep.subr.mxu0 0.0
      %741 = vmatpush1.msra.mxu0 %v356
      %742 = vmatprep.subr.mxu0 0.0
      %743 = vmatpush1.msra.mxu0 %v357
      %744 = vmatprep.subr.mxu0 0.0
      %745 = vmatpush1.msra.mxu0 %v358
      %746 = vmatprep.subr.mxu0 0.0
      %747 = vmatpush1.msra.mxu0 %v359
      %748 = vmatprep.subr.mxu0 0.0
      %749 = vmatpush1.msra.mxu0 %v360
      %750 = vmatprep.subr.mxu0 0.0
      %751 = vmatpush1.msra.mxu0 %v361
      %752 = vmatprep.subr.mxu0 0.0
      %753 = vmatpush1.msra.mxu0 %v362
      %754 = vmatprep.subr.mxu0 0.0
      %755 = vmatpush1.msra.mxu0 %v363
      %756 = vmatprep.subr.mxu0 0.0
      %757 = vmatpush1.msra.mxu0 %v364
      %758 = vmatprep.subr.mxu0 0.0
      %759 = vmatpush1.msra.mxu0 %v365
      %760 = vmatprep.subr.mxu0 0.0
      %761 = vmatpush1.msra.mxu0 0.0
      %762 = vmatprep.subr.mxu0 0.0
      %763 = vmatpush1.msra.mxu0 0.0
      %764 = vmatprep.subr.mxu0 0.0
      %765 = vmatpush1.msra.mxu0 0.0
      %766 = vmatprep.subr.mxu0 0.0
      %767 = vmatpush1.msra.mxu0 0.0
      %768 = vmatprep.subr.mxu0 0.0
      %769 = vmatpush1.msra.mxu0 0.0
      %770 = vmatprep.subr.mxu0 0.0
      %771 = vmatpush1.msra.mxu0 0.0
      %772 = vmatprep.subr.mxu0 0.0
      %773 = vmatpush1.msra.mxu0 0.0
      %774 = vmatprep.subr.mxu0 0.0
      %775 = vmatpush1.msra.mxu0 0.0
      %776 = vmatprep.subr.mxu0 0.0
      %777 = vmatpush1.msra.mxu0 0.0
      %778 = vmatprep.subr.mxu0 0.0
      %779 = vmatpush1.msra.mxu0 0.0
      %780 = vmatprep.subr.mxu0 0.0
      %781 = vmatpush1.msra.mxu0 0.0
      %782 = vmatprep.subr.mxu0 0.0
      %783 = vmatpush1.msra.mxu0 0.0
      %784 = vmatprep.subr.mxu0 0.0
      %785 = vmatpush1.msra.mxu0 0.0
      %786 = vmatprep.subr.mxu0 0.0
      %787 = vmatpush1.msra.mxu0 0.0
      %788 = vmatprep.subr.mxu0 0.0
      %789 = vmatpush1.msra.mxu0 0.0
      %790 = vmatprep.subr.mxu0 0.0
      %791 = vmatpush1.msra.mxu0 0.0
      %792 = vmatprep.mubr.f32.mxu0 0.0
      %793 = vmatmul.mubr.f32.gmra.mrb[0].mxu0 %v318
      %v794 = vpop.f32.mrb[0].mxu0
      %v795 = vadd.f32 %v570, %v794
      %v796 = vpop.f32.mrb[0].mxu0
      %797 = vmatprep.mubr.f32.mxu0 0.0
      %798 = vmatmul.mubr.f32.gmra.mrb[0].mxu0 %v319
      %v799 = vpop.f32.mrb[0].mxu0
      %v800 = vadd.f32 %v575, %v799
      %v801 = vpop.f32.mrb[0].mxu0
      %802 = vmatprep.mubr.f32.mxu0 0.0
      %803 = vmatmul.mubr.f32.gmra.mrb[0].mxu0 %v320
      %v804 = vpop.f32.mrb[0].mxu0
      %v805 = vadd.f32 %v580, %v804
      %v806 = vpop.f32.mrb[0].mxu0
      %807 = vmatprep.mubr.f32.mxu0 0.0
      %808 = vmatmul.mubr.f32.gmra.mrb[0].mxu0 %v321
      %v809 = vpop.f32.mrb[0].mxu0
      %v810 = vadd.f32 %v585, %v809
      %v811 = vpop.f32.mrb[0].mxu0
      %812 = vmatprep.mubr.f32.mxu0 0.0
      %813 = vmatmul.mubr.f32.gmra.mrb[0].mxu0 %v322
      %v814 = vpop.f32.mrb[0].mxu0
      %v815 = vadd.f32 %v590, %v814
      %v816 = vpop.f32.mrb[0].mxu0
      %817 = vmatprep.mubr.f32.mxu0 0.0
      %818 = vmatmul.mubr.f32.gmra.mrb[0].mxu0 %v323
      %v819 = vpop.f32.mrb[0].mxu0
      %v820 = vadd.f32 %v595, %v819
      %v821 = vpop.f32.mrb[0].mxu0
      %822 = vmatprep.mubr.f32.mxu0 0.0
      %823 = vmatmul.mubr.f32.gmra.mrb[0].mxu0 %v324
      %v824 = vpop.f32.mrb[0].mxu0
      %v825 = vadd.f32 %v600, %v824
      %v826 = vpop.f32.mrb[0].mxu0
      %827 = vmatprep.mubr.f32.mxu0 0.0
      %828 = vmatmul.mubr.f32.gmra.mrb[0].mxu0 %v325
      %v829 = vpop.f32.mrb[0].mxu0
      %v830 = vadd.f32 %v605, %v829
      %v831 = vpop.f32.mrb[0].mxu0
      %832 = vmatprep.mubr.f32.mxu0 0.0
      %833 = vmatmul.mubr.f32.gmra.mrb[0].mxu0 %v326
      %v834 = vpop.f32.mrb[0].mxu0
      %v835 = vadd.f32 %v610, %v834
      %v836 = vpop.f32.mrb[0].mxu0
      %837 = vmatprep.mubr.f32.mxu0 0.0
      %838 = vmatmul.mubr.f32.gmra.mrb[0].mxu0 %v327
      %v839 = vpop.f32.mrb[0].mxu0
      %v840 = vadd.f32 %v615, %v839
      %v841 = vpop.f32.mrb[0].mxu0
      %842 = vmatprep.mubr.f32.mxu0 0.0
      %843 = vmatmul.mubr.f32.gmra.mrb[0].mxu0 %v328
      %v844 = vpop.f32.mrb[0].mxu0
      %v845 = vadd.f32 %v620, %v844
      %v846 = vpop.f32.mrb[0].mxu0
      %847 = vmatprep.mubr.f32.mxu0 0.0
      %848 = vmatmul.mubr.f32.gmra.mrb[0].mxu0 %v329
      %v849 = vpop.f32.mrb[0].mxu0
      %v850 = vadd.f32 %v625, %v849
      %v851 = vpop.f32.mrb[0].mxu0
      %852 = vmatprep.mubr.f32.mxu0 0.0
      %853 = vmatmul.mubr.f32.gmra.mrb[0].mxu0 %v330
      %v854 = vpop.f32.mrb[0].mxu0
      %v855 = vadd.f32 %v630, %v854
      %v856 = vpop.f32.mrb[0].mxu0
      %857 = vmatprep.mubr.f32.mxu0 0.0
      %858 = vmatmul.mubr.f32.gmra.mrb[0].mxu0 %v331
      %v859 = vpop.f32.mrb[0].mxu0
      %v860 = vadd.f32 %v635, %v859
      %v861 = vpop.f32.mrb[0].mxu0
      %862 = vmatprep.mubr.f32.mxu0 0.0
      %863 = vmatmul.mubr.f32.gmra.mrb[0].mxu0 %v332
      %v864 = vpop.f32.mrb[0].mxu0
      %v865 = vadd.f32 %v640, %v864
      %v866 = vpop.f32.mrb[0].mxu0
      %867 = vmatprep.mubr.f32.mxu0 0.0
      %868 = vmatmul.mubr.f32.gmra.mrb[0].mxu0 %v333
      %v869 = vpop.f32.mrb[0].mxu0
      %v870 = vadd.f32 %v645, %v869
      %v871 = vpop.f32.mrb[0].mxu0
      %872 = vmatprep.mubr.f32.mxu0 0.0
      %873 = vmatmul.mubr.f32.gmra.mrb[0].mxu0 %v334
      %v874 = vpop.f32.mrb[0].mxu0
      %v875 = vadd.f32 %v650, %v874
      %v876 = vpop.f32.mrb[0].mxu0
      %877 = vmatprep.mubr.f32.mxu0 0.0
      %878 = vmatmul.mubr.f32.gmra.mrb[0].mxu0 %v335
      %v879 = vpop.f32.mrb[0].mxu0
      %v880 = vadd.f32 %v655, %v879
      %v881 = vpop.f32.mrb[0].mxu0
      %882 = vmatprep.mubr.f32.mxu0 0.0
      %883 = vmatmul.mubr.f32.gmra.mrb[0].mxu0 %v336
      %v884 = vpop.f32.mrb[0].mxu0
      %v885 = vadd.f32 %v660, %v884
      %v886 = vpop.f32.mrb[0].mxu0
      %887 = vmatprep.mubr.f32.mxu0 0.0
      %888 = vmatmul.mubr.f32.gmra.mrb[0].mxu0 %v337
      %v889 = vpop.f32.mrb[0].mxu0
      %v890 = vadd.f32 %v665, %v889
      %v891 = vpop.f32.mrb[0].mxu0
      %892 = vmatprep.mubr.f32.mxu0 0.0
      %893 = vmatmul.mubr.f32.gmra.mrb[0].mxu0 %v338
      %v894 = vpop.f32.mrb[0].mxu0
      %v895 = vadd.f32 %v670, %v894
      %v896 = vpop.f32.mrb[0].mxu0
      %897 = vmatprep.mubr.f32.mxu0 0.0
      %898 = vmatmul.mubr.f32.gmra.mrb[0].mxu0 %v339
      %v899 = vpop.f32.mrb[0].mxu0
      %v900 = vadd.f32 %v675, %v899
      %v901 = vpop.f32.mrb[0].mxu0
      %902 = vmatprep.mubr.f32.mxu0 0.0
      %903 = vmatmul.mubr.f32.gmra.mrb[0].mxu0 %v340
      %v904 = vpop.f32.mrb[0].mxu0
      %v905 = vadd.f32 %v680, %v904
      %v906 = vpop.f32.mrb[0].mxu0
      %907 = vmatprep.mubr.f32.mxu0 0.0
      %908 = vmatmul.mubr.f32.gmra.mrb[0].mxu0 %v341
      %v909 = vpop.f32.mrb[0].mxu0
      %v910 = vadd.f32 %v685, %v909
      %v911 = vpop.f32.mrb[0].mxu0
      %912 = vmatprep.mubr.f32.mxu0 0.0
      %913 = vmatmul.mubr.f32.gmra.mrb[0].mxu0 %v342
      %v914 = vpop.f32.mrb[0].mxu0
      %v915 = vadd.f32 %v690, %v914
      %v916 = vpop.f32.mrb[0].mxu0
      %917 = vmatprep.mubr.f32.mxu0 0.0
      %918 = vmatmul.mubr.f32.gmra.mrb[0].mxu0 %v343
      %v919 = vpop.f32.mrb[0].mxu0
      %v920 = vadd.f32 %v695, %v919
      %v921 = vpop.f32.mrb[0].mxu0
      %922 = vmatprep.mubr.f32.mxu0 0.0
      %923 = vmatmul.mubr.f32.gmra.mrb[0].mxu0 %v344
      %v924 = vpop.f32.mrb[0].mxu0
      %v925 = vadd.f32 %v700, %v924
      %v926 = vpop.f32.mrb[0].mxu0
      %927 = vmatprep.mubr.f32.mxu0 0.0
      %928 = vmatmul.mubr.f32.gmra.mrb[0].mxu0 %v345
      %v929 = vpop.f32.mrb[0].mxu0
      %v930 = vadd.f32 %v705, %v929
      %v931 = vpop.f32.mrb[0].mxu0
      %932 = vmatprep.mubr.f32.mxu0 0.0
      %933 = vmatmul.mubr.f32.gmra.mrb[0].mxu0 %v346
      %v934 = vpop.f32.mrb[0].mxu0
      %v935 = vadd.f32 %v710, %v934
      %v936 = vpop.f32.mrb[0].mxu0
      %937 = vmatprep.mubr.f32.mxu0 0.0
      %938 = vmatmul.mubr.f32.gmra.mrb[0].mxu0 %v347
      %v939 = vpop.f32.mrb[0].mxu0
      %v940 = vadd.f32 %v715, %v939
      %v941 = vpop.f32.mrb[0].mxu0
      %942 = vmatprep.mubr.f32.mxu0 0.0
      %943 = vmatmul.mubr.f32.gmra.mrb[0].mxu0 %v348
      %v944 = vpop.f32.mrb[0].mxu0
      %v945 = vadd.f32 %v720, %v944
      %v946 = vpop.f32.mrb[0].mxu0
      %947 = vmatprep.mubr.f32.mxu0 0.0
      %948 = vmatmul.mubr.f32.gmra.mrb[0].mxu0 %v349
      %v949 = vpop.f32.mrb[0].mxu0
      %v950 = vadd.f32 %v725, %v949
      %v951 = vpop.f32.mrb[0].mxu0
      %952 = vdwg.mxu0
      %v953 = vld [vmem:[%s308] sm:$0x1]
      %v955 = vlaneseq
      %v956 = vshrl.u32 %v955, 7
      %v957 = vsub.s32 0, %v956
      %v958 = vrot.slane %v953, %v957
      %v960 = vadd.f32 %v795, %v958
      %v961 = vadd.f32 %v800, %v958
      %v962 = vadd.f32 %v805, %v958
      %v963 = vadd.f32 %v810, %v958
      %v964 = vadd.f32 %v815, %v958
      %v965 = vadd.f32 %v820, %v958
      %v966 = vadd.f32 %v825, %v958
      %v967 = vadd.f32 %v830, %v958
      %v968 = vadd.f32 %v835, %v958
      %v969 = vadd.f32 %v840, %v958
      %v970 = vadd.f32 %v845, %v958
      %v971 = vadd.f32 %v850, %v958
      %v972 = vadd.f32 %v855, %v958
      %v973 = vadd.f32 %v860, %v958
      %v974 = vadd.f32 %v865, %v958
      %v975 = vadd.f32 %v870, %v958
      %v976 = vadd.f32 %v875, %v958
      %v977 = vadd.f32 %v880, %v958
      %v978 = vadd.f32 %v885, %v958
      %v979 = vadd.f32 %v890, %v958
      %v980 = vadd.f32 %v895, %v958
      %v981 = vadd.f32 %v900, %v958
      %v982 = vadd.f32 %v905, %v958
      %v983 = vadd.f32 %v910, %v958
      %v984 = vadd.f32 %v915, %v958
      %v985 = vadd.f32 %v920, %v958
      %v986 = vadd.f32 %v925, %v958
      %v987 = vadd.f32 %v930, %v958
      %v988 = vadd.f32 %v935, %v958
      %v989 = vadd.f32 %v940, %v958
      %v990 = vadd.f32 %v945, %v958
      %v991 = vadd.f32 %v950, %v958
      %992 = vst [vmem:[%s316] sm:$0xff] %v960
      %993 = vst [vmem:[%s316 + $0x8] sm:$0xff] %v961
      %994 = vst [vmem:[%s316 + $0x10] sm:$0xff] %v962
      %995 = vst [vmem:[%s316 + $0x18] sm:$0xff] %v963
      %996 = vst [vmem:[%s316 + $0x20] sm:$0xff] %v964
      %997 = vst [vmem:[%s316 + $0x28] sm:$0xff] %v965
      %998 = vst [vmem:[%s316 + $0x30] sm:$0xff] %v966
      %999 = vst [vmem:[%s316 + $0x38] sm:$0xff] %v967
      %1000 = vst [vmem:[%s316 + $0x40] sm:$0xff] %v968
      %1001 = vst [vmem:[%s316 + $0x48] sm:$0xff] %v969
      %1002 = vst [vmem:[%s316 + $0x50] sm:$0xff] %v970
      %1003 = vst [vmem:[%s316 + $0x58] sm:$0xff] %v971
      %1004 = vst [vmem:[%s316 + $0x60] sm:$0xff] %v972
      %1005 = vst [vmem:[%s316 + $0x68] sm:$0xff] %v973
      %1006 = vst [vmem:[%s316 + $0x70] sm:$0xff] %v974
      %1007 = vst [vmem:[%s316 + $0x78] sm:$0xff] %v975
      %1008 = vst [vmem:[%s316 + $0x80] sm:$0xff] %v976
      %1009 = vst [vmem:[%s316 + $0x88] sm:$0xff] %v977
      %1010 = vst [vmem:[%s316 + $0x90] sm:$0xff] %v978
      %1011 = vst [vmem:[%s316 + $0x98] sm:$0xff] %v979
      %1012 = vst [vmem:[%s316 + $0xa0] sm:$0xff] %v980
      %1013 = vst [vmem:[%s316 + $0xa8] sm:$0xff] %v981
      %1014 = vst [vmem:[%s316 + $0xb0] sm:$0xff] %v982
      %1015 = vst [vmem:[%s316 + $0xb8] sm:$0xff] %v983
      %1016 = vst [vmem:[%s316 + $0xc0] sm:$0xff] %v984
      %1017 = vst [vmem:[%s316 + $0xc8] sm:$0xff] %v985
      %1018 = vst [vmem:[%s316 + $0xd0] sm:$0xff] %v986
      %1019 = vst [vmem:[%s316 + $0xd8] sm:$0xff] %v987
      %1020 = vst [vmem:[%s316 + $0xe0] sm:$0xff] %v988
      %1021 = vst [vmem:[%s316 + $0xe8] sm:$0xff] %v989
      %1022 = vst [vmem:[%s316 + $0xf0] sm:$0xff] %v990
      %1023 = vst [vmem:[%s316 + $0xf8] sm:$0xff] %v991
      %s1024 = smul.u32 32, %s20
      %p1025 = scmp.lt.s32.totalorder %s1024, 127
      %s1026 = scalar_select %p1025, %s1024, 127
      %p1027 = scmp.lt.s32.totalorder %s21, 0
      %s1028 = scalar_select %p1027, %s21, 0
      %s1029 = sadd.s32 %s1028, %s1026
      %s1030 = smul.addr %s1029, 8
      %s1031 = scalar_lea.vmem %s5, %s1030
      // Predicated region
      $region41: #{affine_dynamics_forward.1} parent=39 // pred_check
        %p1032 = pneg %p178
      $region42: #{affine_dynamics_forward.1} parent=39 // pred_check_branch
        %1034 = sbr.rel (%p1032) target = $region44
      $region43: #{affine_dynamics_forward.1} parent=39 // pred_region
        %s1035 = smul.u32 32, %s20
      $region44: #{affine_dynamics_forward.1} parent=39 // pred_fallthru
        _
    $region40: #{affine_dynamics_forward.1} parent=5 // pred_fallthru
      _
    %p1036 = scmp.le.s32.totalorder 2, %s11
    // Predicated region
    $region45: #{affine_dynamics_forward.1} parent=5 // pred_check
      %p1037 = pneg %p1036
    $region46: #{affine_dynamics_forward.1} parent=5 // pred_check_branch
      %1039 = sbr.rel (%p1037) target = $region48
    $region47: #{affine_dynamics_forward.1} parent=5 // pred_region
      %s1040 = ssub.s32 %s11, 2
      // Predicated region
      $region49: #{affine_dynamics_forward.1} parent=47 // pred_check
        %p1041 = pneg %p184
      $region50: #{affine_dynamics_forward.1} parent=47 // pred_check_branch
        %1043 = sbr.rel (%p1041) target = $region52
      $region51: #{affine_dynamics_forward.1} parent=47 // pred_region
        %s1044 = smul.u32 32, %s22
        %p1045 = scmp.lt.s32.totalorder %s1044, 127
        %s1046 = scalar_select %p1045, %s1044, 127
        %p1047 = scmp.lt.s32.totalorder %s23, 0
        %s1048 = scalar_select %p1047, %s23, 0
        %s1049 = sadd.s32 %s1048, %s1046
        %s1050 = smul.addr %s1049, 8
        %s1051 = scalar_lea.vmem %s5, %s1050
      $region52: #{affine_dynamics_forward.1} parent=47 // pred_fallthru
        _
    $region48: #{affine_dynamics_forward.1} parent=5 // pred_fallthru
      _
  $region6: #{affine_dynamics_forward.1} parent=0 // loop_footer
    %s15 = sadd.s32 1, %s11
  $region7: #{affine_dynamics_forward.1} parent=0 // loop_footer_branch
    %10 = sbr.rel target = $region3
  $region8: #{affine_dynamics_forward.1} parent=0 // loop_exit
    _

</llo_original>
